<compile_context>
chip_gen: v7x
topology: tpu7x:2x2x1
jax: 0.10.0
libtpu: 0.0.40
codegen_flags: <defaults>
</compile_context>

<pallas_src>
import functools
import math

import numpy as np
import jax
import jax.numpy as jnp
from jax.experimental import pallas as pl
from jax.experimental.pallas import tpu as pltpu


# ----------------------------------------------------------------------------
# pltpu.roll sign convention (probed at startup so the reflection-shift math is
# independent of whether pltpu.roll follows np.roll or the opposite sign).
# ----------------------------------------------------------------------------
_ROLL_SIGN = -1  # -1 <=> pltpu.roll matches np.roll (out[i] = in[i - shift])


def _detect_roll_sign():
    def probe(x_ref, o_ref):
        o_ref[...] = pltpu.roll(x_ref[...], 1, 1)

    x = jnp.broadcast_to(jnp.arange(128, dtype=jnp.float32), (8, 128))
    y = pl.pallas_call(
        probe, out_shape=jax.ShapeDtypeStruct((8, 128), jnp.float32))(x)
    v = float(y[0, 0])
    if v == 1.0:
        return 1          # out[i] = in[i + shift]
    return -1             # np.roll convention (v == 127.0)


def _lane_read(v, k, m):
    """Value y with y[:, i] = v[:, (i + k) % m] (constant lane-axis shift)."""
    return pltpu.roll(v, (_ROLL_SIGN * k) % m, 1)


# ----------------------------------------------------------------------------
# In-kernel building blocks
# ----------------------------------------------------------------------------
def _reflect_shift(v, d, idx, extent, step, m):
    """Read v at (coordinate + d) along one spatial axis with reflection pad=1.

    v:    (S, m) f32, lane index = h*W + w; the shifted axis has `extent`
          positions and lane stride `step`.
    idx:  (S, m) int32 per-lane coordinate along that axis.
    """
    if d == 0:
        return v
    fwd = _lane_read(v, d * step, m)     # reads coord + d (wraps; masked below)
    bwd = _lane_read(v, -d * step, m)    # reads coord - d == reflected value
    mask = (idx < extent - d) if d > 0 else (idx >= -d)
    return jnp.where(mask, fwd, bwd)


def _conv3x3_reflect(x, w_ref, b_ref, height, width, tapmat_ref):
    """3x3 reflection-padded conv + bias + LeakyReLU(0.2), lane-dense layout.

    x:          (S_in, M) f32 value, M = height*width, lane = h*width + w,
                sublane = (image, channel).
    w_ref:      (9, S_out, S_in) bf16 block-diagonal tap weights, tap = kh*3+kw.
    b_ref:      (S_out, 1) f32.
    tapmat_ref: None (use pltpu.roll taps) or (9, M, M) bf16 0/1 gather
                matrices (used when M is not a multiple of 128 lanes).
    Returns (S_out, M) f32.
    """
    s_in, m = x.shape
    x_bf = x.astype(jnp.bfloat16)

    if tapmat_ref is None:
        lane = jax.lax.broadcasted_iota(jnp.int32, (s_in, m), 1)
        wi = lane % width
        hi = lane // width
        # the three W-shifted (reflected) maps are shared across the kh taps
        xw = {dw: _reflect_shift(x, dw, wi, width, 1, m) for dw in (-1, 0, 1)}

    acc = None
    for kh in range(3):
        for kw in range(3):
            t = kh * 3 + kw
            if tapmat_ref is None:
                tap = _reflect_shift(xw[kw - 1], kh - 1, hi, height, width,
                                     m).astype(jnp.bfloat16)
            else:
                tap = jnp.dot(x_bf, tapmat_ref[t],
                              preferred_element_type=jnp.float32
                              ).astype(jnp.bfloat16)
            part = jnp.dot(w_ref[t], tap, preferred_element_type=jnp.float32)
            acc = part if acc is None else acc + part
    acc = acc + b_ref[...]
    return jnp.maximum(acc, 0.2 * acc)          # LeakyReLU(0.2)


def _generator_kernel(*refs, stage_hw, has_tapmat, num_stages):
    """Whole Generator_nopos forward in one kernel (everything VMEM-resident)."""
    it = iter(refs)
    x = next(it)[...].astype(jnp.float32)        # (N*C1, H1*W1)

    stages = []
    for s in range(num_stages):
        w1, b1, w2, b2 = next(it), next(it), next(it), next(it)
        tm = next(it) if has_tapmat[s] else None
        if s < num_stages - 1:
            wu, bu, u2t = next(it), next(it), next(it)
        else:
            wu = bu = u2t = None
        stages.append((w1, b1, w2, b2, tm, wu, bu, u2t))
    out_refs = [next(it) for _ in range(num_stages)]

    for s in range(num_stages):
        sh, sw = stage_hw[s]
        w1, b1, w2, b2, tm, wu, bu, u2t = stages[s]

        y = _conv3x3_reflect(x, w1, b1, sh, sw, tm)      # conv1 + LeakyReLU
        y = _conv3x3_reflect(y, w2, b2, sh, sw, tm)      # conv2 + LeakyReLU
        out_refs[s][...] = y.astype(out_refs[s].dtype)   # stage feature (f32)

        if s < num_stages - 1:
            # Upsample block, fused: 1x1 channel mix first (commutes exactly
            # with the per-channel linear bicubic resampling), then one stacked
            # bf16 spatial GEMM for all images/channels, then bias.
            z = jnp.dot(wu[...], y.astype(jnp.bfloat16),
                        preferred_element_type=jnp.float32)   # (N*Cn, M)
            up = jnp.dot(z.astype(jnp.bfloat16), u2t[...],
                         preferred_element_type=jnp.float32)  # (N*Cn, 4M)
            x = up + bu[...]


# ----------------------------------------------------------------------------
# Bicubic (align_corners=False, a=-0.75) x2 upsampling as a precomputed matrix
# (matches F.interpolate(scale_factor=2, mode='bicubic') semantics).
# ----------------------------------------------------------------------------
def _cubic(x, a=-0.75):
    x = abs(x)
    if x <= 1.0:
        return (a + 2.0) * x ** 3 - (a + 3.0) * x ** 2 + 1.0
    if x < 2.0:
        return a * x ** 3 - 5.0 * a * x ** 2 + 8.0 * a * x - 4.0 * a
    return 0.0


def bicubic_1d_matrix(size):
    out = 2 * size
    U = np.zeros((out, size), dtype=np.float32)
    for i in range(out):
        src = (i + 0.5) / 2.0 - 0.5
        f = int(math.floor(src))
        t = src - f
        dists = (t + 1.0, t, 1.0 - t, 2.0 - t)
        for k in range(4):
            idx = min(max(f - 1 + k, 0), size - 1)   # border clamp (PyTorch)
            U[i, idx] += _cubic(dists[k])
    return U


def bicubic_2d_matrix(size):
    u = bicubic_1d_matrix(size)
    return np.kron(u, u).astype(np.float32)          # (4*size^2, size^2)


def _tap_matrices(height, width):
    """(9, M, M) 0/1 matrices T_t with (x @ T_t)[:, h*W+w] = reflected tap."""
    m = height * width
    mats = np.zeros((9, m, m), dtype=np.float32)
    for kh in range(3):
        dh = kh - 1
        for kw in range(3):
            dw = kw - 1
            t = kh * 3 + kw
            for h in range(height):
                hh = h + dh
                if hh < 0 or hh >= height:
                    hh = h - dh
                for w in range(width):
                    ww = w + dw
                    if ww < 0 or ww >= width:
                        ww = w - dw
                    mats[t, hh * width + ww, h * width + w] = 1.0
    return mats


# ----------------------------------------------------------------------------
# Forward pass (one pallas_call for the whole network)
# ----------------------------------------------------------------------------
def generator_nopos_forward(packed, x_nchw):
    n, c1, h1, w1 = x_nchw.shape
    dims = [c1, c1 // 2, c1 // 4, c1 // 8]
    stage_hw = tuple((h1 * 2 ** s, w1 * 2 ** s) for s in range(4))
    has_tapmat = tuple(("tapmat" in packed[f"stage{s + 1}"]) for s in range(4))

    flat_inputs = [x_nchw.reshape(n * c1, h1 * w1)]
    for s in range(4):
        st = packed[f"stage{s + 1}"]
        flat_inputs += [st["w1"], st["b1"], st["w2"], st["b2"]]
        if has_tapmat[s]:
            flat_inputs.append(st["tapmat"])
        if s < 3:
            flat_inputs += [st["wu"], st["bu"], st["u2t"]]

    out_shape = tuple(
        jax.ShapeDtypeStruct((n * dims[s], stage_hw[s][0] * stage_hw[s][1]),
                             jnp.float32)
        for s in range(4))

    # advisory cost estimate
    flops = 0
    for s in range(4):
        nc = n * dims[s]
        m = stage_hw[s][0] * stage_hw[s][1]
        flops += 2 * 2 * 9 * nc * nc * m              # two 3x3 convs
        if has_tapmat[s]:
            flops += 2 * 2 * 9 * nc * m * m           # tap-gather GEMMs
        if s < 3:
            ncn = n * dims[s + 1]
            flops += 2 * ncn * nc * m                 # fused 1x1 conv
            flops += 2 * ncn * m * (4 * m)            # stacked bicubic GEMM
    nbytes = sum(int(np.prod(a.shape)) * a.dtype.itemsize for a in flat_inputs)
    nbytes += sum(int(np.prod(o.shape)) * 4 for o in out_shape)

    kernel = functools.partial(_generator_kernel, stage_hw=stage_hw,
                               has_tapmat=has_tapmat, num_stages=4)
    outs = pl.pallas_call(
        kernel,
        out_shape=out_shape,
        in_specs=[pl.BlockSpec(memory_space=pltpu.MemorySpace.VMEM)]
        * len(flat_inputs),
        out_specs=tuple(pl.BlockSpec(memory_space=pltpu.MemorySpace.VMEM)
                        for _ in range(4)),
        cost_estimate=pl.CostEstimate(flops=int(flops), transcendentals=0,
                                      bytes_accessed=int(nbytes)),
    )(*flat_inputs)

    return [outs[s].reshape(n, dims[s], *stage_hw[s]) for s in range(4)]


# ----------------------------------------------------------------------------
# Parameter initialization + packing for the (batch*channels, H*W) layout
# ----------------------------------------------------------------------------
def init_params(key, gf_dim):
    dims = [gf_dim, gf_dim // 2, gf_dim // 4, gf_dim // 8]
    keys = iter(jax.random.split(key, 32))

    def nrm(shape, scale):
        return scale * jax.random.normal(next(keys), shape, dtype=jnp.float32)

    params = {}
    for s, c in enumerate(dims):           # ConvBlock: two conv(c->c, 3x3)
        fan = 1.0 / math.sqrt(9 * c)
        params[f"dec{s+1}_w1"] = nrm((c, c, 3, 3), fan)
        params[f"dec{s+1}_b1"] = nrm((c,), 0.01)
        params[f"dec{s+1}_w2"] = nrm((c, c, 3, 3), fan)
        params[f"dec{s+1}_b2"] = nrm((c,), 0.01)
    for s in range(3):                     # Upsample: conv(cin->cout, 1x1)
        cin, cout = dims[s], dims[s + 1]
        params[f"up{s+1}_w"] = nrm((cout, cin, 1, 1), 1.0 / math.sqrt(cin))
        params[f"up{s+1}_b"] = nrm((cout,), 0.01)
    return params


def pack_params(params, bottom_width, batch):
    """Re-layout params for the kernel (done once, outside jit).

    Block-diagonal (over the batch) weights are baked in, so repack if the
    batch size changes.
    """
    n = batch
    eye = jnp.eye(n, dtype=jnp.float32)

    def conv_taps(w):                  # (Co,Ci,3,3) -> (9, n*Co, n*Ci) bf16
        co, ci = w.shape[0], w.shape[1]
        taps = jnp.transpose(w, (2, 3, 0, 1)).reshape(9, co, ci)
        bd = jnp.einsum("ab,tij->taibj", eye, taps).reshape(9, n * co, n * ci)
        return bd.astype(jnp.bfloat16)

    def blockdiag(w):                  # (Co,Ci) -> (n*Co, n*Ci) bf16
        co, ci = w.shape
        return jnp.einsum("ab,ij->aibj", eye, w).reshape(
            n * co, n * ci).astype(jnp.bfloat16)

    def tile_bias(b):                  # (C,) -> (n*C, 1) f32
        return jnp.tile(b, (n,)).reshape(n * b.shape[0], 1).astype(jnp.float32)

    packed = {}
    for s in range(4):
        st = {
            "w1": conv_taps(params[f"dec{s+1}_w1"]),
            "b1": tile_bias(params[f"dec{s+1}_b1"]),
            "w2": conv_taps(params[f"dec{s+1}_w2"]),
            "b2": tile_bias(params[f"dec{s+1}_b2"]),
        }
        size = bottom_width * (2 ** s)
        if (size * size) % 128 != 0:   # tiny stages: MXU tap gather, no rolls
            st["tapmat"] = jnp.asarray(_tap_matrices(size, size)
                                       ).astype(jnp.bfloat16)
        if s < 3:
            st["wu"] = blockdiag(params[f"up{s+1}_w"][:, :, 0, 0])
            st["bu"] = tile_bias(params[f"up{s+1}_b"])
            st["u2t"] = jnp.asarray(bicubic_2d_matrix(size).T
                                    ).astype(jnp.bfloat16)   # (HW, 4HW) bf16
        packed[f"stage{s+1}"] = st
    return packed


# ----------------------------------------------------------------------------
# Pure-JAX f32 reference of the PyTorch forward (for the numerical self-check)
# ----------------------------------------------------------------------------
def _reference_forward(params, x, u1ds):
    hp = jax.lax.Precision.HIGHEST

    def lrelu(v):
        return jnp.maximum(v, 0.2 * v)

    def conv3x3(v, w, b):
        vp = jnp.pad(v, ((0, 0), (0, 0), (1, 1), (1, 1)), mode="reflect")
        y = jax.lax.conv_general_dilated(
            vp, w, window_strides=(1, 1), padding="VALID",
            dimension_numbers=("NCHW", "OIHW", "NCHW"), precision=hp)
        return y + b[None, :, None, None]

    feats = []
    cur = x
    for s in range(4):
        v = lrelu(conv3x3(cur, params[f"dec{s+1}_w1"], params[f"dec{s+1}_b1"]))
        v = lrelu(conv3x3(v, params[f"dec{s+1}_w2"], params[f"dec{s+1}_b2"]))
        feats.append(v)
        if s < 3:
            u = u1ds[s]
            vu = jnp.einsum("ph,nchw->ncpw", u, v, precision=hp)
            vu = jnp.einsum("qw,ncpw->ncpq", u, vu, precision=hp)
            w1x1 = params[f"up{s+1}_w"][:, :, 0, 0]
            cur = (jnp.einsum("oc,nchw->nohw", w1x1, vu, precision=hp)
                   + params[f"up{s+1}_b"][None, :, None, None])
    return feats


# ----------------------------------------------------------------------------
if __name__ == "__main__":
    gf_dim, bottom_width, batch = 32, 4, 2      # args.gf_dim, args.bottom_width

    _ROLL_SIGN = _detect_roll_sign()            # probe pltpu.roll convention

    key = jax.random.PRNGKey(0)
    pkey, xkey = jax.random.split(key)
    params = init_params(pkey, gf_dim)
    packed = pack_params(params, bottom_width, batch)

    x = jax.random.normal(xkey, (batch, gf_dim, bottom_width, bottom_width),
                          dtype=jnp.float32)

    fwd = jax.jit(generator_nopos_forward)
    feats = fwd(packed, x)
    jax.block_until_ready(feats)

    # shape sanity (matches the PyTorch feature list)
    assert feats[0].shape == (batch, gf_dim, bottom_width, bottom_width)
    assert feats[1].shape == (batch, gf_dim // 2, 2 * bottom_width, 2 * bottom_width)
    assert feats[2].shape == (batch, gf_dim // 4, 4 * bottom_width, 4 * bottom_width)
    assert feats[3].shape == (batch, gf_dim // 8, 8 * bottom_width, 8 * bottom_width)
    assert all(bool(jnp.all(jnp.isfinite(f))) for f in feats)

    # numerical check against a pure-JAX f32 reference (bf16 kernel tolerance)
    u1ds = [jnp.asarray(bicubic_1d_matrix(bottom_width * 2 ** s)) for s in range(3)]
    refs = _reference_forward(params, x, u1ds)
    for i, (f, r) in enumerate(zip(feats, refs)):
        err = float(jnp.max(jnp.abs(f - r)) / (jnp.max(jnp.abs(r)) + 1e-8))
        assert err < 0.1, f"feature {i} mismatch: scaled max err {err:.4f}"

    print("KERNEL_OK")
</pallas_src>

<mosaic_0001>
module attributes {stable_mosaic.version = 11 : i64} {
  func.func @probe(%arg0: memref<8x128xf32, #tpu.memory_space<vmem>>, %arg1: memref<8x128xf32, #tpu.memory_space<vmem>>) attributes {dimension_semantics = [], scalar_prefetch = 0 : i64, scratch_operands = 0 : i64, tpu.core_type = #tpu.core_type<tc>} {
    %c0 = arith.constant 0 : index
    %c0_0 = arith.constant 0 : index
    %0 = vector.load %arg0[%c0, %c0_0] : memref<8x128xf32, #tpu.memory_space<vmem>>, vector<8x128xf32>
    %c1_i32 = arith.constant 1 : i32
    %1 = tpu.dynamic_rotate %0 by %c1_i32 dim 1 : vector<8x128xf32>, i32 -> vector<8x128xf32>
    %c0_1 = arith.constant 0 : index
    %c0_2 = arith.constant 0 : index
    %2 = vector.load %arg1[%c0_1, %c0_2] : memref<8x128xf32, #tpu.memory_space<vmem>>, vector<8x128xf32>
    tpu.vector_store %arg1[%c0_1, %c0_2], %1 {strides = array<i32>} : memref<8x128xf32, #tpu.memory_space<vmem>>, vector<8x128xf32>,
    return
  }
}

</mosaic_0001>

<llo_original>
// kernel: tpu_custom_call.1
$region0: #{tpu_custom_call.1}
  #allocation0 [shape = 'u32[]', space=smem, size = 0x4, offset = 0x4, fixed_abs, tag = 'smem constant byte address 0x4 - core index']
  #allocation1 [shape = 'u32[144,128]{1,0:T(1,128)}', space=vmem, size = 0x12000, scoped, tag = 'internal scratch']
  %s0 = inlined_call_operand.hbm [shape: f32[8,128], index: 0, kind: input, shape index: {}]
  %s1 = inlined_call_operand.hbm [shape: f32[8,128], index: 1, kind: output, shape index: {}]
  %s2 = sld [smem:[#allocation0]]
  $region18: #{tpu_custom_call.1} parent=0
    _
  %s4 = ssub.s32 1, %s2
  %s5 = scalar_select 0, %s4, %s2
  $region1: #{tpu_custom_call.1} parent=0
    #allocation2 [shape = 'u8[4096]{0}', space=vmem, size = 0x1000, scoped, tag = 'input window, operand 0, single buffered']
    #allocation3 [shape = 's32[1]{0}', space=sflag, size = 0x4, scoped, tag = 'scoped memory for tpu_custom_call.1']
    #allocation4 [shape = 's32[1]{0}', space=sflag, size = 0x4, scoped, tag = 'scoped memory for tpu_custom_call.1']
    #allocation5 [shape = 'u8[4096]{0}', space=vmem, size = 0x1000, scoped, tag = 'output window, operand 0, single buffered']
    %6 = vsyncpa [#allocation3], 0
    %7 = vsyncpa [#allocation4], 0
    // Predicated region
    $region2: #{tpu_custom_call.1} parent=1 // pred_check
      _
    $region3: #{tpu_custom_call.1} parent=1 // pred_check_branch
      %9 = sbr.rel (0) target = $region5
    $region4: #{tpu_custom_call.1} parent=1 // pred_region
      %s11 = ssub.s32 128, 128
      %12 = vsyncadd [#allocation3], %s11
      %s14 = sshll.u32 [#allocation2], 4
      %s15 = int_to_ptr.vmem [resolvable:$true] %s14
      %17 = dma.hbm_to_vmem [thread:$0]  %s0, 128, %s15, [#allocation3]
    $region5: #{tpu_custom_call.1} parent=1 // pred_fallthru
      _
    // Predicated region
    $region6: #{tpu_custom_call.1} parent=1 // pred_check
      _
    $region7: #{tpu_custom_call.1} parent=1 // pred_check_branch
      %19 = sbr.rel (0) target = $region9
    $region8: #{tpu_custom_call.1} parent=1 // pred_region
      %20 = dma.done [#allocation3], 128
    $region9: #{tpu_custom_call.1} parent=1 // pred_fallthru
      _
    %v21 = vld [vmem:[#allocation2] sm:$0xff]
    %22 = vrot.lane.b32.xlu0 %v21, 1
    %v23 = vpop.permute.xlu0 %22
    %24 = vst [vmem:[#allocation5] sm:$0xff] %v23
    // Predicated region
    $region10: #{tpu_custom_call.1} parent=1 // pred_check
      _
    $region11: #{tpu_custom_call.1} parent=1 // pred_check_branch
      %26 = sbr.rel (0) target = $region13
    $region12: #{tpu_custom_call.1} parent=1 // pred_region
      %s28 = ssub.s32 128, 128
      %29 = vsyncadd [#allocation4], %s28
      %s31 = sshll.u32 [#allocation5], 4
      %s32 = int_to_ptr.vmem [resolvable:$true] %s31
      %34 = dma.vmem_to_hbm [thread:$0]  %s32, 128, %s1, [#allocation4]
    $region13: #{tpu_custom_call.1} parent=1 // pred_fallthru
      _
    // Predicated region
    $region14: #{tpu_custom_call.1} parent=1 // pred_check
      _
    $region15: #{tpu_custom_call.1} parent=1 // pred_check_branch
      %36 = sbr.rel (0) target = $region17
    $region16: #{tpu_custom_call.1} parent=1 // pred_region
      %37 = dma.done [#allocation4], 128
    $region17: #{tpu_custom_call.1} parent=1 // pred_fallthru
      _
    %38 = vsyncpa [#allocation3], 1
    %39 = vsyncpa [#allocation4], 1

</llo_original>
